<compile_context>
chip_gen: v7x
topology: tpu7x:2x2x1
jax: 0.10.0
libtpu: 0.0.40
codegen_flags: <defaults>
</compile_context>

<pallas_src>
import jax
import jax.numpy as jnp
from jax.experimental import pallas as pl
from jax.experimental.pallas import tpu as pltpu


def _round_up(x, m):
    return ((x + m - 1) // m) * m


def _pool_msd_fc_kernel(h_ref, m_ref, s_ref, w_ref, b_ref, o_ref,
                        fsum_ref, msum_ref):
    """Masked mean pooling (seq-reduction) + dropout scale + linear head.

    h_ref:    (tb, ts, Hp) f32  last_hidden_states tile
    m_ref:    (tb, ts)     f32  attention mask tile
    s_ref:    (tb, Hp)     f32  averaged multi-sample-dropout scale
    w_ref:    (Hp, tn)     f32  fc weight, transposed
    b_ref:    (1, tn)      f32  fc bias
    o_ref:    (tb, tn)     f32  output logits tile
    fsum_ref: (tb, Hp)     f32  scratch: running sum_s(h * m)
    msum_ref: (tb, 1)      f32  scratch: running sum_s(m)
    """
    s_idx = pl.program_id(2)

    @pl.when(s_idx == 0)
    def _():
        fsum_ref[...] = jnp.zeros_like(fsum_ref)
        msum_ref[...] = jnp.zeros_like(msum_ref)

    m = m_ref[...]                                   # (tb, ts)
    h = h_ref[...]                                   # (tb, ts, Hp)
    fsum_ref[...] += jnp.sum(h * m[:, :, None], axis=1)
    msum_ref[...] += jnp.sum(m, axis=1, keepdims=True)

    @pl.when(s_idx == pl.num_programs(2) - 1)
    def _():
        denom = jnp.maximum(msum_ref[...], 1e-9)     # MeanPooling clamp(min=1e-9)
        feat = (fsum_ref[...] / denom) * s_ref[...]  # multi-sample dropout folded in
        o_ref[...] = (jnp.dot(feat, w_ref[...],
                              preferred_element_type=jnp.float32)
                      + b_ref[...]).astype(o_ref.dtype)


def msd_dropout_scale(key, p, n_msd, batch, hidden):
    """Per-element scale s.t. mean_i(dropout_i(x)) == s * x (exact fold)."""
    if n_msd <= 0 or p <= 0.0:
        return jnp.ones((batch, hidden), jnp.float32)
    if p >= 1.0:
        return jnp.zeros((batch, hidden), jnp.float32)
    keys = jax.random.split(key, n_msd)
    masks = jax.vmap(
        lambda k: jax.random.bernoulli(k, 1.0 - p, (batch, hidden)))(keys)
    return masks.astype(jnp.float32).mean(axis=0) / (1.0 - p)


def custom_model_head_forward(last_hidden_states, attention_mask, weight, bias,
                              *, p=0.1, n_msd=1, training=False,
                              dropout_key=None, tb=8, ts=128, tn=512):
    """last_hidden_states: (B,S,H); attention_mask: (B,S); weight: (C,H); bias: (C,)."""
    B, S, H = last_hidden_states.shape
    C = weight.shape[0]

    h = last_hidden_states.astype(jnp.float32)
    m = attention_mask.astype(jnp.float32)
    w_t = jnp.transpose(weight).astype(jnp.float32)               # (H, C)
    b2d = (jnp.zeros((1, C), jnp.float32) if bias is None
           else bias.reshape(1, C).astype(jnp.float32))

    if training:
        if dropout_key is None:
            dropout_key = jax.random.PRNGKey(0)
        scale = msd_dropout_scale(dropout_key, p, n_msd, B, H)
    else:
        scale = jnp.ones((B, H), jnp.float32)

    # ---- tiling: batch/class/seq tiled; hidden & class lane-padded to 128 ----
    tb_eff = min(tb, _round_up(B, 8))
    ts_eff = min(ts, _round_up(S, 8))
    tn_eff = min(tn, _round_up(C, 128))
    Bp = _round_up(B, tb_eff)
    Sp = _round_up(S, ts_eff)
    Hp = _round_up(H, 128)
    Cp = _round_up(C, tn_eff)

    h_p = jnp.pad(h, ((0, Bp - B), (0, Sp - S), (0, Hp - H)))
    m_p = jnp.pad(m, ((0, Bp - B), (0, Sp - S)))
    s_p = jnp.pad(scale, ((0, Bp - B), (0, Hp - H)))
    w_p = jnp.pad(w_t, ((0, Hp - H), (0, Cp - C)))
    b_p = jnp.pad(b2d, ((0, 0), (0, Cp - C)))

    grid = (Bp // tb_eff, Cp // tn_eff, Sp // ts_eff)

    out = pl.pallas_call(
        _pool_msd_fc_kernel,
        out_shape=jax.ShapeDtypeStruct((Bp, Cp), jnp.float32),
        grid_spec=pltpu.PrefetchScalarGridSpec(
            num_scalar_prefetch=0,
            grid=grid,
            in_specs=[
                pl.BlockSpec((tb_eff, ts_eff, Hp), lambda i, j, s: (i, s, 0)),  # h
                pl.BlockSpec((tb_eff, ts_eff), lambda i, j, s: (i, s)),         # mask
                pl.BlockSpec((tb_eff, Hp), lambda i, j, s: (i, 0)),             # msd scale
                pl.BlockSpec((Hp, tn_eff), lambda i, j, s: (0, j)),             # W^T
                pl.BlockSpec((1, tn_eff), lambda i, j, s: (0, j)),              # bias
            ],
            out_specs=pl.BlockSpec((tb_eff, tn_eff), lambda i, j, s: (i, j)),
            scratch_shapes=[
                pltpu.VMEM((tb_eff, Hp), jnp.float32),   # pooled-sum accumulator
                pltpu.VMEM((tb_eff, 1), jnp.float32),    # mask-sum accumulator
            ],
        ),
        compiler_params=pltpu.CompilerParams(
            dimension_semantics=("parallel", "parallel", "arbitrary"),
            vmem_limit_bytes=96 * 1024 * 1024),
    )(h_p, m_p, s_p, w_p, b_p)

    return out[:B, :C]


if __name__ == "__main__":
    key = jax.random.PRNGKey(0)
    k_hid, k_w, k_drop = jax.random.split(key, 3)

    # Small shapes consistent with the head of the module.
    batch, seq, hidden, num_classes = 2, 8, 32, 4
    n_msd, p = 5, 0.2
    initializer_range = 0.02

    # Stand-in for the transformer backbone's last_hidden_state.
    last_hidden_states = jax.random.normal(k_hid, (batch, seq, hidden),
                                           jnp.float32)
    lengths = jnp.array([6, 8], jnp.int32)
    attention_mask = (jnp.arange(seq)[None, :] < lengths[:, None]).astype(
        jnp.float32)

    # fc initialized like _init_weights: normal(0, initializer_range), bias=0.
    weight = initializer_range * jax.random.normal(
        k_w, (num_classes, hidden), jnp.float32)
    bias = jnp.zeros((num_classes,), jnp.float32)

    # Pure-JAX reference: masked mean pooling.
    msum = jnp.maximum(attention_mask.sum(axis=1, keepdims=True), 1e-9)
    feat_ref = (last_hidden_states * attention_mask[:, :, None]).sum(axis=1) / msum

    # ---- eval path: dropouts are identity, output == fc(feature) ----
    y_eval = custom_model_head_forward(last_hidden_states, attention_mask,
                                       weight, bias, p=p, n_msd=n_msd,
                                       training=False)
    y_eval = jax.block_until_ready(y_eval)
    y_eval_ref = feat_ref @ weight.T + bias
    assert jnp.allclose(y_eval, y_eval_ref, atol=1e-4, rtol=1e-4), "eval mismatch"

    # ---- training path: explicit multi-sample-dropout reference ----
    y_tr = custom_model_head_forward(last_hidden_states, attention_mask,
                                     weight, bias, p=p, n_msd=n_msd,
                                     training=True, dropout_key=k_drop)
    y_tr = jax.block_until_ready(y_tr)
    keys = jax.random.split(k_drop, n_msd)
    masks = jax.vmap(
        lambda k: jax.random.bernoulli(k, 1.0 - p, (batch, hidden)))(keys)
    masks = masks.astype(jnp.float32)
    y_tr_ref = sum((feat_ref * masks[i] / (1.0 - p)) @ weight.T + bias
                   for i in range(n_msd)) / n_msd
    assert jnp.allclose(y_tr, y_tr_ref, atol=1e-4, rtol=1e-4), "train mismatch"

    print("KERNEL_OK")
</pallas_src>

<mosaic_0001>
module attributes {stable_mosaic.version = 11 : i64} {
  func.func @_pool_msd_fc_kernel(%arg0: i32, %arg1: i32, %arg2: i32, %arg3: memref<8x8x128xf32, #tpu.memory_space<vmem>>, %arg4: memref<8x8xf32, #tpu.memory_space<vmem>>, %arg5: memref<8x128xf32, #tpu.memory_space<vmem>>, %arg6: memref<128x128xf32, #tpu.memory_space<vmem>>, %arg7: memref<1x128xf32, #tpu.memory_space<vmem>>, %arg8: memref<8x128xf32, #tpu.memory_space<vmem>>, %arg9: memref<8x128xf32, #tpu.memory_space<vmem>>, %arg10: memref<8x1xf32, #tpu.memory_space<vmem>>) attributes {dimension_semantics = [#tpu.dimension_semantics<parallel>, #tpu.dimension_semantics<parallel>, #tpu.dimension_semantics<arbitrary>], iteration_bounds = array<i64: 1, 1, 1>, scalar_prefetch = 0 : i64, scratch_operands = 2 : i64, tpu.core_type = #tpu.core_type<tc>, window_params = [{transform_indices = @transform_0, window_bounds = array<i64: 8, 8, 128>}, {transform_indices = @transform_1, window_bounds = array<i64: 8, 8>}, {transform_indices = @transform_2, window_bounds = array<i64: 8, 128>}, {transform_indices = @transform_3, window_bounds = array<i64: 128, 128>}, {transform_indices = @transform_4, window_bounds = array<i64: 1, 128>}, {transform_indices = @transform_5, window_bounds = array<i64: 8, 128>}]} {
    %c0_i32 = arith.constant 0 : i32
    %0 = arith.cmpi eq, %arg2, %c0_i32 : i32
    %1 = arith.extui %0 : i1 to i32
    %c0_i32_0 = arith.constant 0 : i32
    %2 = arith.cmpi ne, %1, %c0_i32_0 : i32
    scf.if %2 {
      %cst_16 = arith.constant 0.000000e+00 : f32
      %20 = vector.broadcast %cst_16 : f32 to vector<8x128xf32>
      %c0_17 = arith.constant 0 : index
      %c0_18 = arith.constant 0 : index
      %21 = vector.load %arg9[%c0_17, %c0_18] : memref<8x128xf32, #tpu.memory_space<vmem>>, vector<8x128xf32>
      tpu.vector_store %arg9[%c0_17, %c0_18], %20 {strides = array<i32>} : memref<8x128xf32, #tpu.memory_space<vmem>>, vector<8x128xf32>,
      %cst_19 = arith.constant 0.000000e+00 : f32
      %22 = vector.broadcast %cst_19 : f32 to vector<8x1xf32>
      %c0_20 = arith.constant 0 : index
      %c0_21 = arith.constant 0 : index
      %23 = vector.load %arg10[%c0_20, %c0_21] : memref<8x1xf32, #tpu.memory_space<vmem>>, vector<8x1xf32>
      tpu.vector_store %arg10[%c0_20, %c0_21], %22 {strides = array<i32>} : memref<8x1xf32, #tpu.memory_space<vmem>>, vector<8x1xf32>,
    } else {
    }
    %c0 = arith.constant 0 : index
    %c0_1 = arith.constant 0 : index
    %3 = vector.load %arg4[%c0, %c0_1] : memref<8x8xf32, #tpu.memory_space<vmem>>, vector<8x8xf32>
    %c0_2 = arith.constant 0 : index
    %c0_3 = arith.constant 0 : index
    %c0_4 = arith.constant 0 : index
    %4 = vector.load %arg3[%c0_2, %c0_3, %c0_4] : memref<8x8x128xf32, #tpu.memory_space<vmem>>, vector<8x8x128xf32>
    %c0_5 = arith.constant 0 : index
    %c0_6 = arith.constant 0 : index
    %5 = vector.load %arg9[%c0_5, %c0_6] : memref<8x128xf32, #tpu.memory_space<vmem>>, vector<8x128xf32>
    %6 = vector.shape_cast %3 : vector<8x8xf32> to vector<8x8x1xf32>
    %7 = vector.broadcast %6 : vector<8x8x1xf32> to vector<8x8x128xf32>
    %8 = arith.mulf %4, %7 : vector<8x8x128xf32>
    %cst = arith.constant dense<0.000000e+00> : vector<8x128xf32>
    %9 = vector.multi_reduction <add>, %8, %cst [1] : vector<8x8x128xf32> to vector<8x128xf32>
    %10 = arith.addf %5, %9 : vector<8x128xf32>
    %c0_7 = arith.constant 0 : index
    %c0_8 = arith.constant 0 : index
    %11 = vector.load %arg9[%c0_7, %c0_8] : memref<8x128xf32, #tpu.memory_space<vmem>>, vector<8x128xf32>
    tpu.vector_store %arg9[%c0_7, %c0_8], %10 {strides = array<i32>} : memref<8x128xf32, #tpu.memory_space<vmem>>, vector<8x128xf32>,
    %c0_9 = arith.constant 0 : index
    %c0_10 = arith.constant 0 : index
    %12 = vector.load %arg10[%c0_9, %c0_10] : memref<8x1xf32, #tpu.memory_space<vmem>>, vector<8x1xf32>
    %cst_11 = arith.constant dense<0.000000e+00> : vector<8xf32>
    %13 = vector.multi_reduction <add>, %3, %cst_11 [1] : vector<8x8xf32> to vector<8xf32>
    %14 = vector.shape_cast %13 : vector<8xf32> to vector<8x1xf32>
    %15 = arith.addf %12, %14 : vector<8x1xf32>
    %c0_12 = arith.constant 0 : index
    %c0_13 = arith.constant 0 : index
    %16 = vector.load %arg10[%c0_12, %c0_13] : memref<8x1xf32, #tpu.memory_space<vmem>>, vector<8x1xf32>
    tpu.vector_store %arg10[%c0_12, %c0_13], %15 {strides = array<i32>} : memref<8x1xf32, #tpu.memory_space<vmem>>, vector<8x1xf32>,
    %c0_i32_14 = arith.constant 0 : i32
    %17 = arith.cmpi eq, %arg2, %c0_i32_14 : i32
    %18 = arith.extui %17 : i1 to i32
    %c0_i32_15 = arith.constant 0 : i32
    %19 = arith.cmpi ne, %18, %c0_i32_15 : i32
    scf.if %19 {
      %c0_16 = arith.constant 0 : index
      %c0_17 = arith.constant 0 : index
      %20 = vector.load %arg10[%c0_16, %c0_17] : memref<8x1xf32, #tpu.memory_space<vmem>>, vector<8x1xf32>
      %cst_18 = arith.constant 9.99999971E-10 : f32
      %21 = vector.broadcast %cst_18 : f32 to vector<8x1xf32>
      %22 = arith.maximumf %20, %21 : vector<8x1xf32>
      %c0_19 = arith.constant 0 : index
      %c0_20 = arith.constant 0 : index
      %23 = vector.load %arg9[%c0_19, %c0_20] : memref<8x128xf32, #tpu.memory_space<vmem>>, vector<8x128xf32>
      %24 = vector.broadcast %22 : vector<8x1xf32> to vector<8x128xf32>
      %25 = arith.divf %23, %24 : vector<8x128xf32>
      %c0_21 = arith.constant 0 : index
      %c0_22 = arith.constant 0 : index
      %26 = vector.load %arg5[%c0_21, %c0_22] : memref<8x128xf32, #tpu.memory_space<vmem>>, vector<8x128xf32>
      %27 = arith.mulf %25, %26 : vector<8x128xf32>
      %c0_23 = arith.constant 0 : index
      %c0_24 = arith.constant 0 : index
      %28 = vector.load %arg6[%c0_23, %c0_24] : memref<128x128xf32, #tpu.memory_space<vmem>>, vector<128x128xf32>
      %cst_25 = arith.constant dense<0.000000e+00> : vector<8x128xf32>
      %29 = tpu.matmul %27, %28, %cst_25 {dimension_numbers = #tpu.dot_dimension_numbers<[1], [0], [0], [1], [0, 0, 1, 1], [], []>} : vector<8x128xf32>, vector<128x128xf32>, vector<8x128xf32> -> vector<8x128xf32>
      %c0_26 = arith.constant 0 : index
      %c0_27 = arith.constant 0 : index
      %30 = vector.load %arg7[%c0_26, %c0_27] : memref<1x128xf32, #tpu.memory_space<vmem>>, vector<1x128xf32>
      %31 = vector.broadcast %30 : vector<1x128xf32> to vector<8x128xf32>
      %32 = arith.addf %29, %31 : vector<8x128xf32>
      %c0_28 = arith.constant 0 : index
      %c0_29 = arith.constant 0 : index
      %33 = vector.load %arg8[%c0_28, %c0_29] : memref<8x128xf32, #tpu.memory_space<vmem>>, vector<8x128xf32>
      tpu.vector_store %arg8[%c0_28, %c0_29], %32 {strides = array<i32>} : memref<8x128xf32, #tpu.memory_space<vmem>>, vector<8x128xf32>,
    } else {
    }
    return
  }
  func.func @transform_0(%arg0: i32, %arg1: i32, %arg2: i32) -> (i32, i32, i32) {
    %c0_i32 = arith.constant 0 : i32
    %c0_i32_0 = arith.constant 0 : i32
    return %arg0, %arg2, %c0_i32 : i32, i32, i32
  }
  func.func @transform_1(%arg0: i32, %arg1: i32, %arg2: i32) -> (i32, i32) {
    %c0_i32 = arith.constant 0 : i32
    return %arg0, %arg2 : i32, i32
  }
  func.func @transform_2(%arg0: i32, %arg1: i32, %arg2: i32) -> (i32, i32) {
    %c0_i32 = arith.constant 0 : i32
    %c0_i32_0 = arith.constant 0 : i32
    return %arg0, %c0_i32 : i32, i32
  }
  func.func @transform_3(%arg0: i32, %arg1: i32, %arg2: i32) -> (i32, i32) {
    %c0_i32 = arith.constant 0 : i32
    %c0_i32_0 = arith.constant 0 : i32
    return %c0_i32, %arg1 : i32, i32
  }
  func.func @transform_4(%arg0: i32, %arg1: i32, %arg2: i32) -> (i32, i32) {
    %c0_i32 = arith.constant 0 : i32
    %c0_i32_0 = arith.constant 0 : i32
    return %c0_i32, %arg1 : i32, i32
  }
  func.func @transform_5(%arg0: i32, %arg1: i32, %arg2: i32) -> (i32, i32) {
    %c0_i32 = arith.constant 0 : i32
    return %arg0, %arg1 : i32, i32
  }
}

</mosaic_0001>

<llo_original>
// kernel: tpu_custom_call.1
$region0: #{tpu_custom_call.1}
  #allocation0 [shape = 'u32[]', space=smem, size = 0x4, offset = 0x4, fixed_abs, tag = 'smem constant byte address 0x4 - core index']
  #allocation1 [shape = 'u32[144,128]{1,0:T(1,128)}', space=vmem, size = 0x12000, scoped, tag = 'internal scratch']
  #allocation2 [shape = 'f32[8,128]{1,0:T(8,128)}', space=vmem, size = 0x1000, scoped, tag = 'scratch operand']
  #allocation3 [shape = 'f32[8,1]{1,0:T(8,128)}', space=vmem, size = 0x1000, scoped, tag = 'scratch operand']
  %s0 = inlined_call_operand.hbm [shape: f32[8,8,128], index: 0, kind: input, shape index: {}]
  %s1 = inlined_call_operand.hbm [shape: f32[8,8], index: 1, kind: input, shape index: {}]
  %s2 = inlined_call_operand.hbm [shape: f32[8,128], index: 2, kind: input, shape index: {}]
  %s3 = inlined_call_operand.hbm [shape: f32[128,128], index: 3, kind: input, shape index: {}]
  %s4 = inlined_call_operand.hbm [shape: f32[1,128], index: 4, kind: input, shape index: {}]
  %s5 = inlined_call_operand.hbm [shape: f32[8,128], index: 5, kind: output, shape index: {}]
  %s6 = sld [smem:[#allocation0]]
  $region58: #{tpu_custom_call.1} parent=0
    _
  %s8 = ssub.s32 1, %s6
  %s9 = scalar_select 0, %s8, %s6
  $region1: #{tpu_custom_call.1} parent=0
    #allocation4 [shape = 'u8[32768]{0}', space=vmem, size = 0x8000, scoped, tag = 'input window, operand 0, single buffered']
    #allocation5 [shape = 's32[1]{0}', space=sflag, size = 0x4, scoped, tag = 'scoped memory for tpu_custom_call.1']
    #allocation6 [shape = 's32[1]{0}', space=sflag, size = 0x4, scoped, tag = 'scoped memory for tpu_custom_call.1']
    #allocation7 [shape = 'u8[4096]{0}', space=vmem, size = 0x1000, scoped, tag = 'input window, operand 1, single buffered']
    #allocation8 [shape = 's32[1]{0}', space=sflag, size = 0x4, scoped, tag = 'scoped memory for tpu_custom_call.1']
    #allocation9 [shape = 'u8[4096]{0}', space=vmem, size = 0x1000, scoped, tag = 'input window, operand 2, single buffered']
    #allocation10 [shape = 'u8[65536]{0}', space=vmem, size = 0x10000, scoped, tag = 'input window, operand 3, single buffered']
    #allocation11 [shape = 's32[1]{0}', space=sflag, size = 0x4, scoped, tag = 'scoped memory for tpu_custom_call.1']
    #allocation12 [shape = 'u8[512]{0}', space=vmem, size = 0x400, scoped, tag = 'input window, operand 4, single buffered']
    #allocation13 [shape = 'u8[4096]{0}', space=vmem, size = 0x1000, scoped, tag = 'output window, operand 0, single buffered']
    %10 = vsyncpa [#allocation5], 0
    %11 = vsyncpa [#allocation8], 0
    %12 = vsyncpa [#allocation11], 0
    %13 = vsyncpa [#allocation6], 0
    // Predicated region
    $region2: #{tpu_custom_call.1} parent=1 // pred_check
      _
    $region3: #{tpu_custom_call.1} parent=1 // pred_check_branch
      %15 = sbr.rel (0) target = $region5
    $region4: #{tpu_custom_call.1} parent=1 // pred_region
      %s17 = ssub.s32 1024, 1024
      %18 = vsyncadd [#allocation5], %s17
      %s19 = sshll.u32 [#allocation4], 4
      %s20 = int_to_ptr.vmem [resolvable:$true] %s19
      %25 = dma.hbm_to_vmem [thread:$0]  %s0, 1024, %s20, [#allocation5], 128, 128, 8
    $region5: #{tpu_custom_call.1} parent=1 // pred_fallthru
      _
    // Predicated region
    $region6: #{tpu_custom_call.1} parent=1 // pred_check
      _
    $region7: #{tpu_custom_call.1} parent=1 // pred_check_branch
      %27 = sbr.rel (0) target = $region9
    $region8: #{tpu_custom_call.1} parent=1 // pred_region
      %s29 = ssub.s32 128, 128
      %30 = vsyncadd [#allocation8], %s29
      %s32 = sshll.u32 [#allocation7], 4
      %s33 = int_to_ptr.vmem [resolvable:$true] %s32
      %35 = dma.hbm_to_vmem [thread:$0]  %s1, 128, %s33, [#allocation8]
    $region9: #{tpu_custom_call.1} parent=1 // pred_fallthru
      _
    // Predicated region
    $region10: #{tpu_custom_call.1} parent=1 // pred_check
      _
    $region11: #{tpu_custom_call.1} parent=1 // pred_check_branch
      %37 = sbr.rel (0) target = $region13
    $region12: #{tpu_custom_call.1} parent=1 // pred_region
      %s39 = ssub.s32 128, 128
      %40 = vsyncadd [#allocation8], %s39
      %s42 = sshll.u32 [#allocation9], 4
      %s43 = int_to_ptr.vmem [resolvable:$true] %s42
      %45 = dma.hbm_to_vmem [thread:$0]  %s2, 128, %s43, [#allocation8]
    $region13: #{tpu_custom_call.1} parent=1 // pred_fallthru
      _
    // Predicated region
    $region14: #{tpu_custom_call.1} parent=1 // pred_check
      _
    $region15: #{tpu_custom_call.1} parent=1 // pred_check_branch
      %47 = sbr.rel (0) target = $region17
    $region16: #{tpu_custom_call.1} parent=1 // pred_region
      %s49 = ssub.s32 2048, 2048
      %50 = vsyncadd [#allocation11], %s49
      %s51 = sshll.u32 [#allocation10], 4
      %s52 = int_to_ptr.vmem [resolvable:$true] %s51
      %57 = dma.hbm_to_vmem [thread:$0]  %s3, 2048, %s52, [#allocation11], 128, 128, 8
    $region17: #{tpu_custom_call.1} parent=1 // pred_fallthru
      _
    // Predicated region
    $region18: #{tpu_custom_call.1} parent=1 // pred_check
      _
    $region19: #{tpu_custom_call.1} parent=1 // pred_check_branch
      %59 = sbr.rel (0) target = $region21
    $region20: #{tpu_custom_call.1} parent=1 // pred_region
      %s61 = ssub.s32 16, 16
      %62 = vsyncadd [#allocation11], %s61
      %s64 = sshll.u32 [#allocation12], 4
      %s65 = int_to_ptr.vmem [resolvable:$true] %s64
      %67 = dma.hbm_to_vmem [thread:$0]  %s4, 16, %s65, [#allocation11]
    $region21: #{tpu_custom_call.1} parent=1 // pred_fallthru
      _
    // Predicated region
    $region22: #{tpu_custom_call.1} parent=1 // pred_check
      _
    $region23: #{tpu_custom_call.1} parent=1 // pred_check_branch
      %69 = sbr.rel (0) target = $region25
    $region24: #{tpu_custom_call.1} parent=1 // pred_region
      %70 = dma.done [#allocation5], 1024
    $region25: #{tpu_custom_call.1} parent=1 // pred_fallthru
      _
    // Predicated region
    $region26: #{tpu_custom_call.1} parent=1 // pred_check
      _
    $region27: #{tpu_custom_call.1} parent=1 // pred_check_branch
      %72 = sbr.rel (0) target = $region29
    $region28: #{tpu_custom_call.1} parent=1 // pred_region
      %73 = dma.done [#allocation8], 128
    $region29: #{tpu_custom_call.1} parent=1 // pred_fallthru
      _
    // Predicated region
    $region30: #{tpu_custom_call.1} parent=1 // pred_check
      _
    $region31: #{tpu_custom_call.1} parent=1 // pred_check_branch
      %75 = sbr.rel (0) target = $region33
    $region32: #{tpu_custom_call.1} parent=1 // pred_region
      %76 = dma.done [#allocation8], 128
    $region33: #{tpu_custom_call.1} parent=1 // pred_fallthru
      _
    // Predicated region
    $region34: #{tpu_custom_call.1} parent=1 // pred_check
      _
    $region35: #{tpu_custom_call.1} parent=1 // pred_check_branch
      %78 = sbr.rel (0) target = $region37
    $region36: #{tpu_custom_call.1} parent=1 // pred_region
      %79 = dma.done [#allocation11], 2048
    $region37: #{tpu_custom_call.1} parent=1 // pred_fallthru
      _
    // Predicated region
    $region38: #{tpu_custom_call.1} parent=1 // pred_check
      _
    $region39: #{tpu_custom_call.1} parent=1 // pred_check_branch
      %81 = sbr.rel (0) target = $region41
    $region40: #{tpu_custom_call.1} parent=1 // pred_region
      %82 = dma.done [#allocation11], 16
    $region41: #{tpu_custom_call.1} parent=1 // pred_fallthru
      _
    %p83 = scmp.eq.s32.totalorder 0, 0
    // Predicated region
    $region42: #{tpu_custom_call.1} parent=1 // pred_check
      %p84 = pneg %p83
    $region43: #{tpu_custom_call.1} parent=1 // pred_check_branch
      %86 = sbr.rel (%p84) target = $region45
    $region44: #{tpu_custom_call.1} parent=1 // pred_region
      %87 = vst [vmem:[#allocation2] sm:$0xff] 0.0
      %vm88 = vcmask 7168
      %89 = vst.msk [vmem:[#allocation3] sm:$0xff] %vm88, 0.0
    $region45: #{tpu_custom_call.1} parent=1 // pred_fallthru
      _
    %v90 = vld [vmem:[#allocation7] sm:$0xff]
    %v91 = vld [vmem:[#allocation4] sm:$0xff]
    %v92 = vld [vmem:[#allocation4 + $0x8] sm:$0xff]
    %v93 = vld [vmem:[#allocation4 + $0x10] sm:$0xff]
    %v94 = vld [vmem:[#allocation4 + $0x18] sm:$0xff]
    %v95 = vld [vmem:[#allocation4 + $0x20] sm:$0xff]
    %v96 = vld [vmem:[#allocation4 + $0x28] sm:$0xff]
    %v97 = vld [vmem:[#allocation4 + $0x30] sm:$0xff]
    %v98 = vld [vmem:[#allocation4 + $0x38] sm:$0xff]
    %v99 = vld [vmem:[#allocation2] sm:$0xff]
    %v100 = vlaneseq
    %v101 = vshrl.u32 %v100, 7
    %v102 = vsub.s32 0, %v101
    %v103 = vrot.slane %v90, %v102
    %105 = vbcast.lane.b32.xlu0 %v103, 256
    %v106 = vpop.permute.xlu0 %105
    %v107 = vlaneseq
    %v108 = vshrl.u32 %v107, 7
    %v109 = vsub.s32 1, %v108
    %v110 = vrot.slane %v90, %v109
    %112 = vbcast.lane.b32.xlu0 %v110, 256
    %v113 = vpop.permute.xlu0 %112
    %v114 = vlaneseq
    %v115 = vshrl.u32 %v114, 7
    %v116 = vsub.s32 2, %v115
    %v117 = vrot.slane %v90, %v116
    %119 = vbcast.lane.b32.xlu0 %v117, 256
    %v120 = vpop.permute.xlu0 %119
    %v121 = vlaneseq
    %v122 = vshrl.u32 %v121, 7
    %v123 = vsub.s32 3, %v122
    %v124 = vrot.slane %v90, %v123
    %126 = vbcast.lane.b32.xlu0 %v124, 256
    %v127 = vpop.permute.xlu0 %126
    %v128 = vlaneseq
    %v129 = vshrl.u32 %v128, 7
    %v130 = vsub.s32 4, %v129
    %v131 = vrot.slane %v90, %v130
    %133 = vbcast.lane.b32.xlu0 %v131, 256
    %v134 = vpop.permute.xlu0 %133
    %v135 = vlaneseq
    %v136 = vshrl.u32 %v135, 7
    %v137 = vsub.s32 5, %v136
    %v138 = vrot.slane %v90, %v137
    %140 = vbcast.lane.b32.xlu0 %v138, 256
    %v141 = vpop.permute.xlu0 %140
    %v142 = vlaneseq
    %v143 = vshrl.u32 %v142, 7
    %v144 = vsub.s32 6, %v143
    %v145 = vrot.slane %v90, %v144
    %147 = vbcast.lane.b32.xlu0 %v145, 256
    %v148 = vpop.permute.xlu0 %147
    %v149 = vlaneseq
    %v150 = vshrl.u32 %v149, 7
    %v151 = vsub.s32 7, %v150
    %v152 = vrot.slane %v90, %v151
    %154 = vbcast.lane.b32.xlu0 %v152, 256
    %v155 = vpop.permute.xlu0 %154
    %v156 = vmul.f32 %v91, %v106
    %v157 = vmul.f32 %v92, %v113
    %v158 = vmul.f32 %v93, %v120
    %v159 = vmul.f32 %v94, %v127
    %v160 = vmul.f32 %v95, %v134
    %v161 = vmul.f32 %v96, %v141
    %v162 = vmul.f32 %v97, %v148
    %v163 = vmul.f32 %v98, %v155
    %v164 = vrot.slane %v156, 4
    %v165 = vadd.f32 %v156, %v164
    %v166 = vrot.slane %v165, 2
    %v167 = vadd.f32 %v165, %v166
    %v168 = vrot.slane %v167, 1
    %v169 = vadd.f32 %v167, %v168
    %v170 = vrot.slane %v157, 4
    %v171 = vadd.f32 %v157, %v170
    %v172 = vrot.slane %v171, 2
    %v173 = vadd.f32 %v171, %v172
    %v174 = vrot.slane %v173, 1
    %v175 = vadd.f32 %v173, %v174
    %v176 = vrot.slane %v158, 4
    %v177 = vadd.f32 %v158, %v176
    %v178 = vrot.slane %v177, 2
    %v179 = vadd.f32 %v177, %v178
    %v180 = vrot.slane %v179, 1
    %v181 = vadd.f32 %v179, %v180
    %v182 = vrot.slane %v159, 4
    %v183 = vadd.f32 %v159, %v182
    %v184 = vrot.slane %v183, 2
    %v185 = vadd.f32 %v183, %v184
    %v186 = vrot.slane %v185, 1
    %v187 = vadd.f32 %v185, %v186
    %v188 = vrot.slane %v160, 4
    %v189 = vadd.f32 %v160, %v188
    %v190 = vrot.slane %v189, 2
    %v191 = vadd.f32 %v189, %v190
    %v192 = vrot.slane %v191, 1
    %v193 = vadd.f32 %v191, %v192
    %v194 = vrot.slane %v161, 4
    %v195 = vadd.f32 %v161, %v194
    %v196 = vrot.slane %v195, 2
    %v197 = vadd.f32 %v195, %v196
    %v198 = vrot.slane %v197, 1
    %v199 = vadd.f32 %v197, %v198
    %v200 = vrot.slane %v162, 4
    %v201 = vadd.f32 %v162, %v200
    %v202 = vrot.slane %v201, 2
    %v203 = vadd.f32 %v201, %v202
    %v204 = vrot.slane %v203, 1
    %v205 = vadd.f32 %v203, %v204
    %v206 = vrot.slane %v163, 4
    %v207 = vadd.f32 %v163, %v206
    %v208 = vrot.slane %v207, 2
    %v209 = vadd.f32 %v207, %v208
    %v210 = vrot.slane %v209, 1
    %v211 = vadd.f32 %v209, %v210
    %vm220 = vcmask 1041409
    %v221 = vsel %vm220, %v175, %v169
    %vm222 = vcmask 1042434
    %v223 = vsel %vm222, %v181, %v221
    %vm224 = vcmask 1043459
    %v225 = vsel %vm224, %v187, %v223
    %vm226 = vcmask 1044484
    %v227 = vsel %vm226, %v193, %v225
    %vm228 = vcmask 1045509
    %v229 = vsel %vm228, %v199, %v227
    %vm230 = vcmask 1046534
    %v231 = vsel %vm230, %v205, %v229
    %vm232 = vcmask 1047559
    %v233 = vsel %vm232, %v211, %v231
    %v235 = vadd.f32 %v99, %v233
    %236 = vst [vmem:[#allocation2] sm:$0xff] %v235
    %v237 = vld [vmem:[#allocation3] sm:$0xff]
    %vm238 = vcmask 64512
    %v239 = vsel %vm238, %v90, 0.0
    %240 = vadd.xlane.f32.xlu0 %v239
    %v241 = vpop.xlane.xlu0 %240
    %v242 = vadd.f32 %v237, %v241
    %vm243 = vcmask 7168
    %244 = vst.msk [vmem:[#allocation3] sm:$0xff] %vm243, %v242
    // Predicated region
    $region46: #{tpu_custom_call.1} parent=1 // pred_check
      %p245 = pneg %p83
    $region47: #{tpu_custom_call.1} parent=1 // pred_check_branch
      %247 = sbr.rel (%p245) target = $region49
    $region48: #{tpu_custom_call.1} parent=1 // pred_region
      %v248 = vld [vmem:[#allocation3] sm:$0xff]
      %v249 = vmax.f32 %v248, 1e-09
      %v250 = vld [vmem:[#allocation2] sm:$0xff]
      %252 = vset.pattern.permute.xlu0 0
      %253 = vperm.xlu0 %252, %v249
      %v254 = vpop.permute.xlu0 %253
      %v256 = vrcp.pop %v254
      %v257 = vmul.f32 %v250, %v256
      %v258 = vld [vmem:[#allocation9] sm:$0xff]
      %v259 = vmul.f32 %v257, %v258
      %v260 = vld [vmem:[#allocation10] sm:$0xff]
      %v261 = vld [vmem:[#allocation10 + $0x8] sm:$0xff]
      %v262 = vld [vmem:[#allocation10 + $0x10] sm:$0xff]
      %v263 = vld [vmem:[#allocation10 + $0x18] sm:$0xff]
      %v264 = vld [vmem:[#allocation10 + $0x20] sm:$0xff]
      %v265 = vld [vmem:[#allocation10 + $0x28] sm:$0xff]
      %v266 = vld [vmem:[#allocation10 + $0x30] sm:$0xff]
      %v267 = vld [vmem:[#allocation10 + $0x38] sm:$0xff]
      %v268 = vld [vmem:[#allocation10 + $0x40] sm:$0xff]
      %v269 = vld [vmem:[#allocation10 + $0x48] sm:$0xff]
      %v270 = vld [vmem:[#allocation10 + $0x50] sm:$0xff]
      %v271 = vld [vmem:[#allocation10 + $0x58] sm:$0xff]
      %v272 = vld [vmem:[#allocation10 + $0x60] sm:$0xff]
      %v273 = vld [vmem:[#allocation10 + $0x68] sm:$0xff]
      %v274 = vld [vmem:[#allocation10 + $0x70] sm:$0xff]
      %v275 = vld [vmem:[#allocation10 + $0x78] sm:$0xff]
      %v276 = vld [vmem:[#allocation12] sm:$0x1]
      %v278 = vlaneseq
      %v279 = vshrl.u32 %v278, 7
      %v280 = vsub.s32 0, %v279
      %v281 = vrot.slane %v276, %v280
      %283 = vmatprep.subr.mxu0 0.0
      %284 = vmatpush1.msra.mxu0 %v260
      %285 = vmatprep.subr.mxu0 0.0
      %286 = vmatpush1.msra.mxu0 %v261
      %287 = vmatprep.subr.mxu0 0.0
      %288 = vmatpush1.msra.mxu0 %v262
      %289 = vmatprep.subr.mxu0 0.0
      %290 = vmatpush1.msra.mxu0 %v263
      %291 = vmatprep.subr.mxu0 0.0
      %292 = vmatpush1.msra.mxu0 %v264
      %293 = vmatprep.subr.mxu0 0.0
      %294 = vmatpush1.msra.mxu0 %v265
      %295 = vmatprep.subr.mxu0 0.0
      %296 = vmatpush1.msra.mxu0 %v266
      %297 = vmatprep.subr.mxu0 0.0
      %298 = vmatpush1.msra.mxu0 %v267
      %299 = vmatprep.subr.mxu0 0.0
      %300 = vmatpush1.msra.mxu0 %v268
      %301 = vmatprep.subr.mxu0 0.0
      %302 = vmatpush1.msra.mxu0 %v269
      %303 = vmatprep.subr.mxu0 0.0
      %304 = vmatpush1.msra.mxu0 %v270
      %305 = vmatprep.subr.mxu0 0.0
      %306 = vmatpush1.msra.mxu0 %v271
      %307 = vmatprep.subr.mxu0 0.0
      %308 = vmatpush1.msra.mxu0 %v272
      %309 = vmatprep.subr.mxu0 0.0
      %310 = vmatpush1.msra.mxu0 %v273
      %311 = vmatprep.subr.mxu0 0.0
      %312 = vmatpush1.msra.mxu0 %v274
      %313 = vmatprep.subr.mxu0 0.0
      %314 = vmatpush1.msra.mxu0 %v275
      %315 = vmatprep.subr.mxu0 0.0
      %316 = vmatpush1.msra.mxu0 0.0
      %317 = vmatprep.subr.mxu0 0.0
      %318 = vmatpush1.msra.mxu0 0.0
      %319 = vmatprep.subr.mxu0 0.0
      %320 = vmatpush1.msra.mxu0 0.0
      %321 = vmatprep.subr.mxu0 0.0
      %322 = vmatpush1.msra.mxu0 0.0
      %323 = vmatprep.subr.mxu0 0.0
      %324 = vmatpush1.msra.mxu0 0.0
      %325 = vmatprep.subr.mxu0 0.0
      %326 = vmatpush1.msra.mxu0 0.0
      %327 = vmatprep.subr.mxu0 0.0
      %328 = vmatpush1.msra.mxu0 0.0
      %329 = vmatprep.subr.mxu0 0.0
      %330 = vmatpush1.msra.mxu0 0.0
      %331 = vmatprep.subr.mxu0 0.0
      %332 = vmatpush1.msra.mxu0 0.0
      %333 = vmatprep.subr.mxu0 0.0
      %334 = vmatpush1.msra.mxu0 0.0
      %335 = vmatprep.subr.mxu0 0.0
      %336 = vmatpush1.msra.mxu0 0.0
      %337 = vmatprep.subr.mxu0 0.0
      %338 = vmatpush1.msra.mxu0 0.0
      %339 = vmatprep.subr.mxu0 0.0
      %340 = vmatpush1.msra.mxu0 0.0
      %341 = vmatprep.subr.mxu0 0.0
      %342 = vmatpush1.msra.mxu0 0.0
      %343 = vmatprep.subr.mxu0 0.0
      %344 = vmatpush1.msra.mxu0 0.0
      %345 = vmatprep.subr.mxu0 0.0
      %346 = vmatpush1.msra.mxu0 0.0
      %347 = vmatprep.mubr.f32.mxu0 0.0
      %348 = vmatmul.mubr.f32.gmra.mrb[0].mxu0 %v259
      %v349 = vpop.f32.mrb[0].mxu0
      %v350 = vadd.f32 %v281, %v349
      %v351 = vpop.f32.mrb[0].mxu0
      %352 = vdwg.mxu0
      %353 = vst [vmem:[#allocation13] sm:$0xff] %v350
    $region49: #{tpu_custom_call.1} parent=1 // pred_fallthru
      _
    // Predicated region
    $region50: #{tpu_custom_call.1} parent=1 // pred_check
      _
    $region51: #{tpu_custom_call.1} parent=1 // pred_check_branch
      %355 = sbr.rel (0) target = $region53
    $region52: #{tpu_custom_call.1} parent=1 // pred_region
      %s357 = ssub.s32 128, 128
      %358 = vsyncadd [#allocation6], %s357
      %s360 = sshll.u32 [#allocation13], 4
      %s361 = int_to_ptr.vmem [resolvable:$true] %s360
      %363 = dma.vmem_to_hbm [thread:$0]  %s361, 128, %s5, [#allocation6]
    $region53: #{tpu_custom_call.1} parent=1 // pred_fallthru
      _
    // Predicated region
    $region54: #{tpu_custom_call.1} parent=1 // pred_check
      _
    $region55: #{tpu_custom_call.1} parent=1 // pred_check_branch
      %365 = sbr.rel (0) target = $region57
    $region56: #{tpu_custom_call.1} parent=1 // pred_region
      %366 = dma.done [#allocation6], 128
    $region57: #{tpu_custom_call.1} parent=1 // pred_fallthru
      _
    %367 = vsyncpa [#allocation5], 1
    %368 = vsyncpa [#allocation8], 1
    %369 = vsyncpa [#allocation11], 1
    %370 = vsyncpa [#allocation6], 1

</llo_original>
